<compile_context>
chip_gen: v6e
topology: v6e:2x2x1
jax: 0.10.0
libtpu: 0.0.40
codegen_flags: <defaults>
</compile_context>

<pallas_src>
import jax
import jax.numpy as jnp
from jax.experimental import pallas as pl
from jax.experimental.pallas import tpu as pltpu


def _round_up(x, m):
    return (x + m - 1) // m * m


# ---------------- Pass 1: conv matmul + per-tile channel sum / sumsq --------
def _conv_stats_kernel(p_ref, w_ref, conv_ref, sum_ref, sumsq_ref):
    # MXU matmul (bf16 or f32 inputs), f32 accumulation.
    x = jnp.dot(p_ref[...], w_ref[...], preferred_element_type=jnp.float32)
    # Statistics from the f32 accumulator BEFORE any downcast; var is
    # finalized in the wrapper as sumsq/M - mean^2 (single reduction sweep).
    sum_ref[...] = jnp.sum(x, axis=0, keepdims=True)
    sumsq_ref[...] = jnp.sum(x * x, axis=0, keepdims=True)
    # Store the conv intermediate in (usually) bf16: halves pass-1 writeback
    # and the pass-2 read of the M x C tensor.
    conv_ref[...] = x.astype(conv_ref.dtype)


# ---------------- Pass 2: fused BN scale/shift (one FMA) + exact GELU -------
def _bn_gelu_kernel(conv_ref, s_ref, t_ref, o_ref):
    y = conv_ref[...].astype(jnp.float32) * s_ref[...] + t_ref[...]
    # exact (erf-based) GELU, matching torch.nn.GELU() default
    o_ref[...] = 0.5 * y * (1.0 + jax.lax.erf(y * 0.7071067811865476))


def conv_bn_gelu(x, weight, bias, gamma, beta, *, padding=0, stride=1,
                 dilation=1, eps=1e-5, tm=512, matmul_dtype=jnp.bfloat16):
    """x: (N, C_in, H, W) NCHW; weight: (C_out, C_in, KH, KW); groups=1."""
    N, C_in, H, W = x.shape
    C_out, C_in_w, KH, KW = weight.shape
    assert C_in == C_in_w  # TODO(synk): groups > 1 not implemented
    # Training-mode BatchNorm subtracts the per-channel batch mean, so the
    # conv bias cancels exactly; it never reaches the kernel.
    del bias

    OH = (H + 2 * padding - dilation * (KH - 1) - 1) // stride + 1
    OW = (W + 2 * padding - dilation * (KW - 1) - 1) // stride + 1

    # --- glue: im2col patch extraction, built directly in matmul dtype ------
    # (single bf16 materialization of the M x K LHS; pad folded in below).
    xc = x.astype(matmul_dtype)
    xp = jnp.pad(xc, ((0, 0), (0, 0), (padding, padding), (padding, padding)))
    cols = []
    for kh in range(KH):
        for kw in range(KW):
            h0 = kh * dilation
            w0 = kw * dilation
            cols.append(xp[:, :, h0:h0 + stride * OH:stride,
                               w0:w0 + stride * OW:stride])
    patches = jnp.stack(cols, axis=0)                 # (KH*KW, N, C_in, OH, OW)
    patches = patches.transpose(1, 3, 4, 2, 0)        # (N, OH, OW, C_in, KH*KW)
    patches = patches.reshape(N * OH * OW, C_in * KH * KW)

    M, K = patches.shape
    w_mat = weight.reshape(C_out, K).T.astype(matmul_dtype)   # (K, C_out)

    # --- lane-dense / tile-aligned padding -----------------------------------
    bpe = jnp.dtype(matmul_dtype).itemsize
    K_pad = _round_up(K, 128)
    C_pad = _round_up(C_out, 128)
    # C tiling: 256-wide chunks match the v6e/v7x MXU and bound the resident
    # weight slab; full width when C is small.
    tc = 256 if C_pad >= 256 else C_pad
    C_pad = _round_up(C_pad, tc)
    num_c = C_pad // tc

    # tm: multiple of 16 (bf16 sublane packing), clamped so the pass-1
    # double-buffered working set fits comfortably in VMEM on all generations.
    tm = max(16, min(int(tm), _round_up(M, 16)))
    tm = _round_up(tm, 16)
    vmem_budget = 24 * 1024 * 1024

    def _p1_bytes(t):
        return 2 * (t * K_pad * bpe + K_pad * tc * bpe + t * tc * bpe
                    + 2 * tc * 4)

    while tm > 16 and _p1_bytes(tm) > vmem_budget:
        tm = _round_up(max(16, tm // 2), 16)
    # TODO(synk): if the K_pad x tc weight slab alone exceeds VMEM, add a K
    # grid axis ('arbitrary') with an f32 accumulator.

    # Pass-2 row tile: multiple of tm, large (amortizes per-grid-step
    # overhead, lane-dense unmasked stores), bounded by VMEM.
    M_pad1 = _round_up(M, tm)
    num_m1_init = M_pad1 // tm
    rows_budget = max(tm, (16 * 1024 * 1024) // (C_pad * 2 * (bpe + 4)))
    tm2_target = min(4096, rows_budget)
    k2 = max(1, min(tm2_target // tm if tm2_target >= tm else 1, num_m1_init))
    tm2 = k2 * tm
    M_pad = _round_up(M_pad1, tm2)
    num_m1 = M_pad // tm
    num_m2 = M_pad // tm2

    patches_p = jnp.pad(patches, ((0, M_pad - M), (0, K_pad - K)))
    w_p = jnp.pad(w_mat, ((0, K_pad - K), (0, C_pad - C_out)))
    gamma_p = jnp.pad(gamma.astype(jnp.float32), (0, C_pad - C_out))
    beta_p = jnp.pad(beta.astype(jnp.float32), (0, C_pad - C_out))

    vmem_limit = 32 * 1024 * 1024   # raises v5e's 16 MiB default; safe on v7x

    # --- pass 1: tiled conv matmul + per-tile statistics ---------------------
    # Grid is (C tiles, M tiles) with M fastest, so the weight block is held
    # resident across the whole M sweep (re-fetched only num_c times).
    conv_out, sums, sumsqs = pl.pallas_call(
        _conv_stats_kernel,
        out_shape=(jax.ShapeDtypeStruct((M_pad, C_pad), matmul_dtype),
                   jax.ShapeDtypeStruct((num_m1, 1, C_pad), jnp.float32),
                   jax.ShapeDtypeStruct((num_m1, 1, C_pad), jnp.float32)),
        grid=(num_c, num_m1),
        in_specs=[pl.BlockSpec((tm, K_pad), lambda c, m: (m, 0)),
                  pl.BlockSpec((K_pad, tc), lambda c, m: (0, c))],
        out_specs=(pl.BlockSpec((tm, tc), lambda c, m: (m, c)),
                   pl.BlockSpec((None, 1, tc), lambda c, m: (m, 0, c)),
                   pl.BlockSpec((None, 1, tc), lambda c, m: (m, 0, c))),
        compiler_params=pltpu.CompilerParams(
            dimension_semantics=("parallel", "parallel"),
            vmem_limit_bytes=vmem_limit),
    )(patches_p, w_p)

    # --- finalize BN statistics (tiny, plain JAX): fold gamma/beta into FMA --
    # NOTE: var = sumsq/M - mean^2 can lose precision if activations drift far
    # from zero mean; acceptable here, otherwise switch to centered sums.
    inv_m = jnp.float32(1.0 / M)                      # real row count, not M_pad
    mean = jnp.sum(sums[:, 0, :], axis=0) * inv_m     # (C_pad,)
    var = jnp.maximum(jnp.sum(sumsqs[:, 0, :], axis=0) * inv_m - mean * mean,
                      0.0)
    s = gamma_p * jax.lax.rsqrt(var + jnp.float32(eps))
    t = beta_p - mean * s

    # --- pass 2: streaming normalize (one FMA) + exact GELU, big row tiles ---
    out = pl.pallas_call(
        _bn_gelu_kernel,
        out_shape=jax.ShapeDtypeStruct((M_pad, C_pad), jnp.float32),
        grid=(num_m2,),
        in_specs=[pl.BlockSpec((tm2, C_pad), lambda i: (i, 0)),
                  pl.BlockSpec((1, C_pad), lambda i: (0, 0)),
                  pl.BlockSpec((1, C_pad), lambda i: (0, 0))],
        out_specs=pl.BlockSpec((tm2, C_pad), lambda i: (i, 0)),
        compiler_params=pltpu.CompilerParams(
            dimension_semantics=("parallel",),
            vmem_limit_bytes=vmem_limit),
    )(conv_out, s.reshape(1, C_pad), t.reshape(1, C_pad))

    # strip padding, back to NCHW (torch layout)
    out = out[:M, :C_out]
    return out.reshape(N, OH, OW, C_out).transpose(0, 3, 1, 2)


if __name__ == "__main__":
    key = jax.random.PRNGKey(0)
    k1, k2, k3 = jax.random.split(key, 3)

    # ConvBNGELU(in_channels=4, out_channels=8, kernel_size=3, padding=1)
    N, C_in, H, W = 2, 4, 16, 16
    C_out, KH, KW = 8, 3, 3
    padding, stride, dilation = 1, 1, 1
    eps = 1e-5

    x = jax.random.normal(k1, (N, C_in, H, W), jnp.float32)

    # Deterministic synthetic parameters (Conv2d-style uniform init; BN
    # default init gamma=1, beta=0).
    fan_in = C_in * KH * KW
    bound = 1.0 / (fan_in ** 0.5)
    weight = jax.random.uniform(k2, (C_out, C_in, KH, KW), jnp.float32,
                                -bound, bound)
    bias = jax.random.uniform(k3, (C_out,), jnp.float32, -bound, bound)
    gamma = jnp.ones((C_out,), jnp.float32)
    beta = jnp.zeros((C_out,), jnp.float32)

    # Pure-JAX reference (includes the conv bias; training-mode BN cancels it).
    conv = jax.lax.conv_general_dilated(
        x, weight, window_strides=(stride, stride),
        padding=[(padding, padding), (padding, padding)],
        rhs_dilation=(dilation, dilation),
        dimension_numbers=("NCHW", "OIHW", "NCHW"))
    conv = conv + bias[None, :, None, None]
    mean = conv.mean(axis=(0, 2, 3), keepdims=True)
    var = jnp.square(conv - mean).mean(axis=(0, 2, 3), keepdims=True)
    ref = (conv - mean) / jnp.sqrt(var + eps)
    ref = ref * gamma[None, :, None, None] + beta[None, :, None, None]
    ref = jax.nn.gelu(ref, approximate=False)

    # Strict semantics check with the f32 path (tm=128 -> 4 M-tiles,
    # exercises the tiled statistics accumulation and the pass-2 retiling).
    y32 = conv_bn_gelu(x, weight, bias, gamma, beta,
                       padding=padding, stride=stride, dilation=dilation,
                       eps=eps, tm=128, matmul_dtype=jnp.float32)
    y32 = jax.block_until_ready(y32)
    assert y32.shape == (N, C_out, H, W)
    err32 = float(jnp.max(jnp.abs(y32 - ref)))
    assert err32 < 1e-3, err32

    # Default (performance) path: bf16 LHS/weight/intermediate, f32 accumulate.
    y16 = conv_bn_gelu(x, weight, bias, gamma, beta,
                       padding=padding, stride=stride, dilation=dilation,
                       eps=eps, tm=128)
    y16 = jax.block_until_ready(y16)
    err16 = float(jnp.max(jnp.abs(y16 - ref)))
    assert err16 < 3e-2, err16   # bf16 matmul-input / bf16 intermediate tolerance

    print("KERNEL_OK")
</pallas_src>

<mosaic_0001>
module attributes {stable_mosaic.version = 11 : i64} {
  func.func @_conv_stats_kernel(%arg0: i32, %arg1: i32, %arg2: memref<128x128xf32, #tpu.memory_space<vmem>>, %arg3: memref<128x128xf32, #tpu.memory_space<vmem>>, %arg4: memref<128x128xf32, #tpu.memory_space<vmem>>, %arg5: memref<1x1x128xf32, #tpu.memory_space<vmem>>, %arg6: memref<1x1x128xf32, #tpu.memory_space<vmem>>) attributes {dimension_semantics = [#tpu.dimension_semantics<parallel>, #tpu.dimension_semantics<parallel>], iteration_bounds = array<i64: 1, 4>, scalar_prefetch = 0 : i64, scratch_operands = 0 : i64, tpu.core_type = #tpu.core_type<tc>, window_params = [{transform_indices = @transform_0, window_bounds = array<i64: 128, 128>}, {transform_indices = @transform_1, window_bounds = array<i64: 128, 128>}, {transform_indices = @transform_2, window_bounds = array<i64: 128, 128>}, {transform_indices = @transform_3, window_bounds = array<i64: 1, 1, 128>}, {transform_indices = @transform_4, window_bounds = array<i64: 1, 1, 128>}]} {
    %c0 = arith.constant 0 : index
    %c0_0 = arith.constant 0 : index
    %0 = vector.load %arg2[%c0, %c0_0] : memref<128x128xf32, #tpu.memory_space<vmem>>, vector<128x128xf32>
    %c0_1 = arith.constant 0 : index
    %c0_2 = arith.constant 0 : index
    %1 = vector.load %arg3[%c0_1, %c0_2] : memref<128x128xf32, #tpu.memory_space<vmem>>, vector<128x128xf32>
    %cst = arith.constant dense<0.000000e+00> : vector<128x128xf32>
    %2 = tpu.matmul %0, %1, %cst {dimension_numbers = #tpu.dot_dimension_numbers<[1], [0], [0], [1], [0, 0, 1, 1], [], []>} : vector<128x128xf32>, vector<128x128xf32>, vector<128x128xf32> -> vector<128x128xf32>
    %cst_3 = arith.constant dense<0.000000e+00> : vector<128xf32>
    %3 = vector.multi_reduction <add>, %2, %cst_3 [0] : vector<128x128xf32> to vector<128xf32>
    %4 = vector.shape_cast %3 : vector<128xf32> to vector<1x128xf32>
    %c0_4 = arith.constant 0 : index
    %c0_5 = arith.constant 0 : index
    %c0_6 = arith.constant 0 : index
    %5 = vector.load %arg5[%c0_4, %c0_5, %c0_6] : memref<1x1x128xf32, #tpu.memory_space<vmem>>, vector<1x1x128xf32>
    %6 = vector.shape_cast %5 : vector<1x1x128xf32> to vector<1x128xf32>
    %7 = vector.shape_cast %4 : vector<1x128xf32> to vector<1x1x128xf32>
    tpu.vector_store %arg5[%c0_4, %c0_5, %c0_6], %7 {strides = array<i32>} : memref<1x1x128xf32, #tpu.memory_space<vmem>>, vector<1x1x128xf32>,
    %8 = arith.mulf %2, %2 : vector<128x128xf32>
    %cst_7 = arith.constant dense<0.000000e+00> : vector<128xf32>
    %9 = vector.multi_reduction <add>, %8, %cst_7 [0] : vector<128x128xf32> to vector<128xf32>
    %10 = vector.shape_cast %9 : vector<128xf32> to vector<1x128xf32>
    %c0_8 = arith.constant 0 : index
    %c0_9 = arith.constant 0 : index
    %c0_10 = arith.constant 0 : index
    %11 = vector.load %arg6[%c0_8, %c0_9, %c0_10] : memref<1x1x128xf32, #tpu.memory_space<vmem>>, vector<1x1x128xf32>
    %12 = vector.shape_cast %11 : vector<1x1x128xf32> to vector<1x128xf32>
    %13 = vector.shape_cast %10 : vector<1x128xf32> to vector<1x1x128xf32>
    tpu.vector_store %arg6[%c0_8, %c0_9, %c0_10], %13 {strides = array<i32>} : memref<1x1x128xf32, #tpu.memory_space<vmem>>, vector<1x1x128xf32>,
    %c0_11 = arith.constant 0 : index
    %c0_12 = arith.constant 0 : index
    %14 = vector.load %arg4[%c0_11, %c0_12] : memref<128x128xf32, #tpu.memory_space<vmem>>, vector<128x128xf32>
    tpu.vector_store %arg4[%c0_11, %c0_12], %2 {strides = array<i32>} : memref<128x128xf32, #tpu.memory_space<vmem>>, vector<128x128xf32>,
    return
  }
  func.func @transform_0(%arg0: i32, %arg1: i32) -> (i32, i32) {
    %c0_i32 = arith.constant 0 : i32
    %c0_i32_0 = arith.constant 0 : i32
    return %arg1, %c0_i32 : i32, i32
  }
  func.func @transform_1(%arg0: i32, %arg1: i32) -> (i32, i32) {
    %c0_i32 = arith.constant 0 : i32
    %c0_i32_0 = arith.constant 0 : i32
    return %c0_i32, %arg0 : i32, i32
  }
  func.func @transform_2(%arg0: i32, %arg1: i32) -> (i32, i32) {
    %c0_i32 = arith.constant 0 : i32
    return %arg1, %arg0 : i32, i32
  }
  func.func @transform_3(%arg0: i32, %arg1: i32) -> (i32, i32, i32) {
    %c0_i32 = arith.constant 0 : i32
    %c0_i32_0 = arith.constant 0 : i32
    return %arg1, %c0_i32, %arg0 : i32, i32, i32
  }
  func.func @transform_4(%arg0: i32, %arg1: i32) -> (i32, i32, i32) {
    %c0_i32 = arith.constant 0 : i32
    %c0_i32_0 = arith.constant 0 : i32
    return %arg1, %c0_i32, %arg0 : i32, i32, i32
  }
}

</mosaic_0001>

<llo_original>
// kernel: tpu_custom_call.1
$region0: #{tpu_custom_call.1}
  #allocation0 [shape = 'u32[]', space=smem, size = 0x4, offset = 0x4, fixed_abs, tag = 'smem constant byte address 0x4 - core index']
  #allocation1 [shape = 'u32[144,128]{1,0:T(1,128)}', space=vmem, size = 0x12000, scoped, tag = 'internal scratch']
  %s0 = inlined_call_operand.hbm [shape: f32[512,128], index: 0, kind: input, shape index: {}]
  %s1 = inlined_call_operand.hbm [shape: f32[128,128], index: 1, kind: input, shape index: {}]
  %s2 = inlined_call_operand.hbm [shape: f32[512,128], index: 2, kind: output, shape index: {0}]
  %s3 = inlined_call_operand.hbm [shape: f32[4,1,128], index: 3, kind: output, shape index: {1}]
  %s4 = inlined_call_operand.hbm [shape: f32[4,1,128], index: 4, kind: output, shape index: {2}]
  %5 = xla_tuple %s2, %s3, %s4
  %s6 = sld [smem:[#allocation0]]
  $region65: #{tpu_custom_call.1} parent=0
    _
  %s8 = ssub.s32 1, %s6
  %s9 = scalar_select 0, %s8, %s6
  $region1: #{tpu_custom_call.1} parent=0
    #allocation2 [shape = 'u8[131072]{0}', space=vmem, size = 0x20000, scoped, tag = 'input window, operand 0']
    #allocation3 [shape = 's32[2]{0}', space=sflag, size = 0x8, scoped, tag = 'scoped memory for tpu_custom_call.1']
    #allocation4 [shape = 's32[2]{0}', space=sflag, size = 0x8, scoped, tag = 'scoped memory for tpu_custom_call.1']
    #allocation5 [shape = 'u8[65536]{0}', space=vmem, size = 0x10000, scoped, tag = 'input window, operand 1, single buffered']
    #allocation6 [shape = 's32[1]{0}', space=sflag, size = 0x4, scoped, tag = 'scoped memory for tpu_custom_call.1']
    #allocation7 [shape = 'u8[131072]{0}', space=vmem, size = 0x20000, scoped, tag = 'output window, operand 0']
    #allocation8 [shape = 'u8[1024]{0}', space=vmem, size = 0x400, scoped, tag = 'output window, operand 1']
    #allocation9 [shape = 's32[2]{0}', space=sflag, size = 0x8, scoped, tag = 'scoped memory for tpu_custom_call.1']
    #allocation10 [shape = 'u8[1024]{0}', space=vmem, size = 0x400, scoped, tag = 'output window, operand 2']
    %10 = vsyncpa [#allocation3], 0
    %s11 = scalar_lea.sflag [#allocation3], 1
    %12 = vsyncpa %s11, 0
    %13 = vsyncpa [#allocation6], 0
    %14 = vsyncpa [#allocation4], 0
    %s15 = scalar_lea.sflag [#allocation4], 1
    %16 = vsyncpa %s15, 0
    %17 = vsyncpa [#allocation9], 0
    %s18 = scalar_lea.sflag [#allocation9], 1
    %19 = vsyncpa %s18, 0
    loop: start=0, step=1, limit=6
    $region2: #{tpu_custom_call.1} parent=1 // loop_pre_header
      _
    $region3: #{tpu_custom_call.1} parent=1 // loop_header
      %s21 = sphi 0, %s25
      %p22 = scmp.ge.s32.totalorder %s21, 6
      %s28 = sphi 0, %s40
      %s29 = sphi 0, %s36
      %s30 = sphi 0, %s28
      %s31 = sphi 0, %s29
      %s32 = sphi 0, %s30
      %s33 = sphi 0, %s31
      %s43 = sphi 0, %s45
      %s46 = sphi 0, %s43
      %s47 = sphi 0, %s46
      %s63 = sphi 0, %s47
      %s69 = sphi 0, %s71
      %s72 = sphi 0, %s69
      %s73 = sphi 0, %s72
      %s89 = sphi 0, %s73
      %s97 = sphi 0, %s99
      %s100 = sphi 0, %s97
      %s101 = sphi 0, %s100
      %s117 = sphi 0, %s101
      %s125 = sphi 0, %s127
      %s128 = sphi 0, %s125
      %s129 = sphi 0, %s128
      %s145 = sphi 0, %s129
      %s153 = sphi 0, %s155
      %s156 = sphi 0, %s153
      %s157 = sphi 0, %s156
      %s173 = sphi 0, %s157
    $region4: #{tpu_custom_call.1} parent=1 // loop_header_branch
      %24 = sbr.rel (%p22) target = $region8
    $region5: #{tpu_custom_call.1} parent=1 // loop_body
      %s26 = ssub.s32 %s21, 1
      %s27 = ssub.s32 %s21, 2
      %s34 = sadd.s32 1, %s29
      %p35 = scmp.ge.s32.totalorder %s34, 4
      %s36 = scalar_select %p35, 0, %s34
      %s37 = sadd.s32 1, %s28
      %s38 = scalar_select %p35, %s37, %s28
      %p39 = scmp.ge.s32.totalorder %s38, 1
      %s40 = scalar_select %p39, 0, %s38
      %s41 = ssub.s32 %s29, %s36
      %p42 = scmp.eq.s32.totalorder %s41, 0
      %s44 = sadd.s32 %s43, 1
      %s45 = scalar_select %p42, %s43, %s44
      %p48 = pneg %p42
      %p49 = scmp.eq.s32.totalorder %s21, 3
      %p50 = por %p48, %p49
      %p51 = scmp.ne.s32.totalorder %s43, %s46
      %p52 = scmp.eq.s32.totalorder %s21, 0
      %p53 = por %p51, %p52
      %p54 = scmp.ne.s32.totalorder %s43, %s46
      %p55 = scmp.eq.s32.totalorder %s26, 3
      %p56 = por %p54, %p55
      %p57 = scmp.ne.s32.totalorder %s46, %s47
      %p58 = scmp.eq.s32.totalorder %s26, 0
      %p59 = por %p57, %p58
      %p60 = scmp.ne.s32.totalorder %s46, %s47
      %p61 = scmp.eq.s32.totalorder %s27, 3
      %p62 = por %p60, %p61
      %p64 = scmp.ne.s32.totalorder %s47, %s63
      %p65 = scmp.eq.s32.totalorder %s27, 0
      %p66 = por %p64, %p65
      %s67 = ssub.s32 %s28, %s40
      %p68 = scmp.eq.s32.totalorder %s67, 0
      %s70 = sadd.s32 %s69, 1
      %s71 = scalar_select %p68, %s69, %s70
      %p74 = pneg %p68
      %p75 = scmp.eq.s32.totalorder %s21, 3
      %p76 = por %p74, %p75
      %p77 = scmp.ne.s32.totalorder %s69, %s72
      %p78 = scmp.eq.s32.totalorder %s21, 0
      %p79 = por %p77, %p78
      %p80 = scmp.ne.s32.totalorder %s69, %s72
      %p81 = scmp.eq.s32.totalorder %s26, 3
      %p82 = por %p80, %p81
      %p83 = scmp.ne.s32.totalorder %s72, %s73
      %p84 = scmp.eq.s32.totalorder %s26, 0
      %p85 = por %p83, %p84
      %p86 = scmp.ne.s32.totalorder %s72, %s73
      %p87 = scmp.eq.s32.totalorder %s27, 3
      %p88 = por %p86, %p87
      %p90 = scmp.ne.s32.totalorder %s73, %s89
      %p91 = scmp.eq.s32.totalorder %s27, 0
      %p92 = por %p90, %p91
      %s93 = ssub.s32 %s29, %s36
      %s94 = ssub.s32 %s28, %s40
      %s95 = sor.u32 %s93, %s94
      %p96 = scmp.eq.s32.totalorder %s95, 0
      %s98 = sadd.s32 %s97, 1
      %s99 = scalar_select %p96, %s97, %s98
      %p102 = pneg %p96
      %p103 = scmp.eq.s32.totalorder %s21, 3
      %p104 = por %p102, %p103
      %p105 = scmp.ne.s32.totalorder %s97, %s100
      %p106 = scmp.eq.s32.totalorder %s21, 0
      %p107 = por %p105, %p106
      %p108 = scmp.ne.s32.totalorder %s97, %s100
      %p109 = scmp.eq.s32.totalorder %s26, 3
      %p110 = por %p108, %p109
      %p111 = scmp.ne.s32.totalorder %s100, %s101
      %p112 = scmp.eq.s32.totalorder %s26, 0
      %p113 = por %p111, %p112
      %p114 = scmp.ne.s32.totalorder %s100, %s101
      %p115 = scmp.eq.s32.totalorder %s27, 3
      %p116 = por %p114, %p115
      %p118 = scmp.ne.s32.totalorder %s101, %s117
      %p119 = scmp.eq.s32.totalorder %s27, 0
      %p120 = por %p118, %p119
      %s121 = ssub.s32 %s29, %s36
      %s122 = ssub.s32 %s28, %s40
      %s123 = sor.u32 %s121, %s122
      %p124 = scmp.eq.s32.totalorder %s123, 0
      %s126 = sadd.s32 %s125, 1
      %s127 = scalar_select %p124, %s125, %s126
      %p130 = pneg %p124
      %p131 = scmp.eq.s32.totalorder %s21, 3
      %p132 = por %p130, %p131
      %p133 = scmp.ne.s32.totalorder %s125, %s128
      %p134 = scmp.eq.s32.totalorder %s21, 0
      %p135 = por %p133, %p134
      %p136 = scmp.ne.s32.totalorder %s125, %s128
      %p137 = scmp.eq.s32.totalorder %s26, 3
      %p138 = por %p136, %p137
      %p139 = scmp.ne.s32.totalorder %s128, %s129
      %p140 = scmp.eq.s32.totalorder %s26, 0
      %p141 = por %p139, %p140
      %p142 = scmp.ne.s32.totalorder %s128, %s129
      %p143 = scmp.eq.s32.totalorder %s27, 3
      %p144 = por %p142, %p143
      %p146 = scmp.ne.s32.totalorder %s129, %s145
      %p147 = scmp.eq.s32.totalorder %s27, 0
      %p148 = por %p146, %p147
      %s149 = ssub.s32 %s29, %s36
      %s150 = ssub.s32 %s28, %s40
      %s151 = sor.u32 %s149, %s150
      %p152 = scmp.eq.s32.totalorder %s151, 0
      %s154 = sadd.s32 %s153, 1
      %s155 = scalar_select %p152, %s153, %s154
      %p158 = pneg %p152
      %p159 = scmp.eq.s32.totalorder %s21, 3
      %p160 = por %p158, %p159
      %p161 = scmp.ne.s32.totalorder %s153, %s156
      %p162 = scmp.eq.s32.totalorder %s21, 0
      %p163 = por %p161, %p162
      %p164 = scmp.ne.s32.totalorder %s153, %s156
      %p165 = scmp.eq.s32.totalorder %s26, 3
      %p166 = por %p164, %p165
      %p167 = scmp.ne.s32.totalorder %s156, %s157
      %p168 = scmp.eq.s32.totalorder %s26, 0
      %p169 = por %p167, %p168
      %p170 = scmp.ne.s32.totalorder %s156, %s157
      %p171 = scmp.eq.s32.totalorder %s27, 3
      %p172 = por %p170, %p171
      %p174 = scmp.ne.s32.totalorder %s157, %s173
      %p175 = scmp.eq.s32.totalorder %s27, 0
      %p176 = por %p174, %p175
      %p177 = scmp.le.s32.totalorder 1, %s21
      %p178 = scmp.lt.s32.totalorder %s21, 5
      %p179 = pnand %p177, %p178
      %p180 = pneg %p179
      // Predicated region
      $region9: #{tpu_custom_call.1} parent=5 // pred_check
        _
      $region10: #{tpu_custom_call.1} parent=5 // pred_check_branch
        %182 = sbr.rel (%p179) target = $region12
      $region11: #{tpu_custom_call.1} parent=5 // pred_region
        %s183 = ssub.s32 %s21, 1
        // Predicated region
        $region13: #{tpu_custom_call.1} parent=11 // pred_check
          %p184 = pneg %p85
        $region14: #{tpu_custom_call.1} parent=11 // pred_check_branch
          %186 = sbr.rel (%p184) target = $region16
        $region15: #{tpu_custom_call.1} parent=11 // pred_region
          %s188 = ssub.s32 2048, 2048
          %189 = vsyncadd [#allocation6], %s188
          %s190 = smul.addr %s30, 128
          %s191 = scalar_lea.hbm %s1, %s190
          %s192 = sshll.u32 [#allocation5], 4
          %s193 = int_to_ptr.vmem [resolvable:$true] %s192
          %198 = dma.hbm_to_vmem [thread:$0]  %s191, 2048, %s193, [#allocation6], 128, 128, 8
        $region16: #{tpu_custom_call.1} parent=11 // pred_fallthru
          _
      $region12: #{tpu_custom_call.1} parent=5 // pred_fallthru
        _
      %p199 = scmp.lt.s32.totalorder %s21, 4
      // Predicated region
      $region17: #{tpu_custom_call.1} parent=5 // pred_check
        %p200 = pneg %p199
      $region18: #{tpu_custom_call.1} parent=5 // pred_check_branch
        %202 = sbr.rel (%p200) target = $region20
      $region19: #{tpu_custom_call.1} parent=5 // pred_region
        // Predicated region
        $region21: #{tpu_custom_call.1} parent=19 // pred_check
          %p203 = pneg %p53
        $region22: #{tpu_custom_call.1} parent=19 // pred_check_branch
          %205 = sbr.rel (%p203) target = $region24
        $region23: #{tpu_custom_call.1} parent=19 // pred_region
          %s206 = sand.u32 %s43, 1
          %s207 = scalar_lea.sflag [#allocation3], %s206
          %s208 = sand.u32 %s43, 1
          %s209 = smul.addr %s208, 128
          %s210 = scalar_lea.vmem [#allocation2], %s209
          %s211 = smul.u32 16, %s29
          %s213 = ssub.s32 2048, 2048
          %214 = vsyncadd %s207, %s213
          %s215 = smul.addr %s211, 128
          %s216 = scalar_lea.hbm %s0, %s215
          %s217 = sshll.u32 %s210, 4
          %s218 = int_to_ptr.vmem [resolvable:$true] %s217
          %223 = dma.hbm_to_vmem [thread:$0]  %s216, 2048, %s218, %s207, 128, 128, 8
        $region24: #{tpu_custom_call.1} parent=19 // pred_fallthru
          _
      $region20: #{tpu_custom_call.1} parent=5 // pred_fallthru
        _
      %p224 = scmp.le.s32.totalorder 1, %s21
      %p225 = scmp.lt.s32.totalorder %s21, 5
      %p226 = pnand %p224, %p225
      %p227 = pneg %p226
      // Predicated region
      $region25: #{tpu_custom_call.1} parent=5 // pred_check
        _
      $region26: #{tpu_custom_call.1} parent=5 // pred_check_branch
        %229 = sbr.rel (%p226) target = $region28
      $region27: #{tpu_custom_call.1} parent=5 // pred_region
        %s230 = ssub.s32 %s21, 1
        %s231 = sand.u32 %s46, 1
        %s232 = scalar_lea.sflag [#allocation3], %s231
        %s233 = sand.u32 %s46, 1
        %s234 = smul.addr %s233, 128
        %s235 = scalar_lea.vmem [#allocation2], %s234
        // Predicated region
        $region29: #{tpu_custom_call.1} parent=27 // pred_check
          %p236 = pneg %p59
        $region30: #{tpu_custom_call.1} parent=27 // pred_check_branch
          %238 = sbr.rel (%p236) target = $region32
        $region31: #{tpu_custom_call.1} parent=27 // pred_region
          %239 = dma.done %s232, 2048
        $region32: #{tpu_custom_call.1} parent=27 // pred_fallthru
          _
        // Predicated region
        $region33: #{tpu_custom_call.1} parent=27 // pred_check
          %p240 = pneg %p85
        $region34: #{tpu_custom_call.1} parent=27 // pred_check_branch
          %242 = sbr.rel (%p240) target = $region36
        $region35: #{tpu_custom_call.1} parent=27 // pred_region
          %243 = dma.done [#allocation6], 2048
        $region36: #{tpu_custom_call.1} parent=27 // pred_fallthru
          _
        %s244 = sand.u32 %s46, 1
        %s245 = scalar_lea.sflag [#allocation3], %s244
        %s246 = sand.u32 %s46, 1
        %s247 = smul.addr %s246, 128
        %s248 = scalar_lea.vmem [#allocation2], %s247
        %p249 = pneg %p59
        %p250 = pneg %p56
        %p251 = pneg %p85
        %p252 = pneg %p82
        %p253 = pneg %p113
        %p254 = pneg %p110
        %s255 = sand.u32 %s100, 1
        %s256 = scalar_lea.sflag [#allocation4], %s255
        %s257 = sand.u32 %s100, 1
        %s258 = smul.addr %s257, 128
        %s259 = scalar_lea.vmem [#allocation7], %s258
        %p260 = pneg %p141
        %p261 = pneg %p138
        %s262 = sand.u32 %s26, 1
        %s263 = scalar_lea.sflag [#allocation9], %s262
        %s264 = sand.u32 %s128, 1
        %s265 = scalar_lea.vmem [#allocation8], %s264
        %p266 = pneg %p169
        %p267 = pneg %p166
        %s268 = sand.u32 %s26, 1
        %s269 = scalar_lea.sflag [#allocation9], %s268
        %s270 = sand.u32 %s156, 1
        %s271 = scalar_lea.vmem [#allocation10], %s270
        %s272 = smul.u32 16, %s31
        %s273 = smul.u32 16, %s31
        %v274 = vld [vmem:[%s235] sm:$0xff]
        %v275 = vld [vmem:[%s235 + $0x8] sm:$0xff]
        %v276 = vld [vmem:[%s235 + $0x10] sm:$0xff]
        %v277 = vld [vmem:[%s235 + $0x18] sm:$0xff]
        %v278 = vld [vmem:[%s235 + $0x20] sm:$0xff]
        %v279 = vld [vmem:[%s235 + $0x28] sm:$0xff]
        %v280 = vld [vmem:[%s235 + $0x30] sm:$0xff]
        %v281 = vld [vmem:[%s235 + $0x38] sm:$0xff]
        %v282 = vld [vmem:[%s235 + $0x40] sm:$0xff]
        %v283 = vld [vmem:[%s235 + $0x48] sm:$0xff]
        %v284 = vld [vmem:[%s235 + $0x50] sm:$0xff]
        %v285 = vld [vmem:[%s235 + $0x58] sm:$0xff]
        %v286 = vld [vmem:[%s235 + $0x60] sm:$0xff]
        %v287 = vld [vmem:[%s235 + $0x68] sm:$0xff]
        %v288 = vld [vmem:[%s235 + $0x70] sm:$0xff]
        %v289 = vld [vmem:[%s235 + $0x78] sm:$0xff]
        %v290 = vld [vmem:[#allocation5] sm:$0xff]
        %v291 = vld [vmem:[#allocation5 + $0x8] sm:$0xff]
        %v292 = vld [vmem:[#allocation5 + $0x10] sm:$0xff]
        %v293 = vld [vmem:[#allocation5 + $0x18] sm:$0xff]
        %v294 = vld [vmem:[#allocation5 + $0x20] sm:$0xff]
        %v295 = vld [vmem:[#allocation5 + $0x28] sm:$0xff]
        %v296 = vld [vmem:[#allocation5 + $0x30] sm:$0xff]
        %v297 = vld [vmem:[#allocation5 + $0x38] sm:$0xff]
        %v298 = vld [vmem:[#allocation5 + $0x40] sm:$0xff]
        %v299 = vld [vmem:[#allocation5 + $0x48] sm:$0xff]
        %v300 = vld [vmem:[#allocation5 + $0x50] sm:$0xff]
        %v301 = vld [vmem:[#allocation5 + $0x58] sm:$0xff]
        %v302 = vld [vmem:[#allocation5 + $0x60] sm:$0xff]
        %v303 = vld [vmem:[#allocation5 + $0x68] sm:$0xff]
        %v304 = vld [vmem:[#allocation5 + $0x70] sm:$0xff]
        %v305 = vld [vmem:[#allocation5 + $0x78] sm:$0xff]
        %306 = vmatprep.subr.mxu0 0.0
        %307 = vmatpush1.msra.mxu0 %v305
        %308 = vmatprep.subr.mxu0 0.0
        %309 = vmatpush1.msra.mxu0 %v304
        %310 = vmatprep.subr.mxu0 0.0
        %311 = vmatpush1.msra.mxu0 %v303
        %312 = vmatprep.subr.mxu0 0.0
        %313 = vmatpush1.msra.mxu0 %v302
        %314 = vmatprep.subr.mxu0 0.0
        %315 = vmatpush1.msra.mxu0 %v301
        %316 = vmatprep.subr.mxu0 0.0
        %317 = vmatpush1.msra.mxu0 %v300
        %318 = vmatprep.subr.mxu0 0.0
        %319 = vmatpush1.msra.mxu0 %v299
        %320 = vmatprep.subr.mxu0 0.0
        %321 = vmatpush1.msra.mxu0 %v298
        %322 = vmatprep.subr.mxu0 0.0
        %323 = vmatpush1.msra.mxu0 %v297
        %324 = vmatprep.subr.mxu0 0.0
        %325 = vmatpush1.msra.mxu0 %v296
        %326 = vmatprep.subr.mxu0 0.0
        %327 = vmatpush1.msra.mxu0 %v295
        %328 = vmatprep.subr.mxu0 0.0
        %329 = vmatpush1.msra.mxu0 %v294
        %330 = vmatprep.subr.mxu0 0.0
        %331 = vmatpush1.msra.mxu0 %v293
        %332 = vmatprep.subr.mxu0 0.0
        %333 = vmatpush1.msra.mxu0 %v292
        %334 = vmatprep.subr.mxu0 0.0
        %335 = vmatpush1.msra.mxu0 %v291
        %336 = vmatprep.subr.mxu0 0.0
        %337 = vmatpush1.msra.mxu0 %v290
        %338 = vmatprep.subr.mxu0 0.0
        %339 = vmatpush2.msra.mxu0 0.0
        %340 = vmatprep.subr.mxu0 0.0
        %341 = vmatpush2.msra.mxu0 0.0
        %342 = vmatprep.subr.mxu0 0.0
        %343 = vmatpush2.msra.mxu0 0.0
        %344 = vmatprep.subr.mxu0 0.0
        %345 = vmatpush2.msra.mxu0 0.0
        %346 = vmatprep.subr.mxu0 0.0
        %347 = vmatpush2.msra.mxu0 0.0
        %348 = vmatprep.subr.mxu0 0.0
        %349 = vmatpush2.msra.mxu0 0.0
        %350 = vmatprep.subr.mxu0 0.0
        %351 = vmatpush2.msra.mxu0 0.0
        %352 = vmatprep.subr.mxu0 0.0
        %353 = vmatpush2.msra.mxu0 0.0
        %354 = vmatprep.subr.mxu0 0.0
        %355 = vmatpush2.msra.mxu0 0.0
        %356 = vmatprep.subr.mxu0 0.0
        %357 = vmatpush2.msra.mxu0 0.0
        %358 = vmatprep.subr.mxu0 0.0
        %359 = vmatpush2.msra.mxu0 0.0
        %360 = vmatprep.subr.mxu0 0.0
        %361 = vmatpush2.msra.mxu0 0.0
        %362 = vmatprep.subr.mxu0 0.0
        %363 = vmatpush2.msra.mxu0 0.0
        %364 = vmatprep.subr.mxu0 0.0
        %365 = vmatpush2.msra.mxu0 0.0
        %366 = vmatprep.subr.mxu0 0.0
        %367 = vmatpush2.msra.mxu0 0.0
        %368 = vmatprep.subr.mxu0 0.0
        %369 = vmatpush2.msra.mxu0 0.0
        %370 = vmatprep.mubr.f32.mxu0 0.0
        %371 = vmatmul.mubr.f32.gmra.mxu0 %v274
        %v372 = vpop.f32.mrf.mxu0
        %v373 = vadd.f32 0.0, %v372
        %v374 = vpop.f32.mrf.mxu0
        %375 = vmatprep.mubr.f32.mxu0 0.0
        %376 = vmatmul.mubr.f32.gmra.mxu0 %v275
        %v377 = vpop.f32.mrf.mxu0
        %v378 = vadd.f32 0.0, %v377
        %v379 = vpop.f32.mrf.mxu0
        %380 = vmatprep.mubr.f32.mxu0 0.0
        %381 = vmatmul.mubr.f32.gmra.mxu0 %v276
        %v382 = vpop.f32.mrf.mxu0
        %v383 = vadd.f32 0.0, %v382
        %v384 = vpop.f32.mrf.mxu0
        %385 = vmatprep.mubr.f32.mxu0 0.0
        %386 = vmatmul.mubr.f32.gmra.mxu0 %v277
        %v387 = vpop.f32.mrf.mxu0
        %v388 = vadd.f32 0.0, %v387
        %v389 = vpop.f32.mrf.mxu0
        %390 = vmatprep.mubr.f32.mxu0 0.0
        %391 = vmatmul.mubr.f32.gmra.mxu0 %v278
        %v392 = vpop.f32.mrf.mxu0
        %v393 = vadd.f32 0.0, %v392
        %v394 = vpop.f32.mrf.mxu0
        %395 = vmatprep.mubr.f32.mxu0 0.0
        %396 = vmatmul.mubr.f32.gmra.mxu0 %v279
        %v397 = vpop.f32.mrf.mxu0
        %v398 = vadd.f32 0.0, %v397
        %v399 = vpop.f32.mrf.mxu0
        %400 = vmatprep.mubr.f32.mxu0 0.0
        %401 = vmatmul.mubr.f32.gmra.mxu0 %v280
        %v402 = vpop.f32.mrf.mxu0
        %v403 = vadd.f32 0.0, %v402
        %v404 = vpop.f32.mrf.mxu0
        %405 = vmatprep.mubr.f32.mxu0 0.0
        %406 = vmatmul.mubr.f32.gmra.mxu0 %v281
        %v407 = vpop.f32.mrf.mxu0
        %v408 = vadd.f32 0.0, %v407
        %v409 = vpop.f32.mrf.mxu0
        %410 = vmatprep.mubr.f32.mxu0 0.0
        %411 = vmatmul.mubr.f32.gmra.mxu0 %v282
        %v412 = vpop.f32.mrf.mxu0
        %v413 = vadd.f32 0.0, %v412
        %v414 = vpop.f32.mrf.mxu0
        %415 = vmatprep.mubr.f32.mxu0 0.0
        %416 = vmatmul.mubr.f32.gmra.mxu0 %v283
        %v417 = vpop.f32.mrf.mxu0
        %v418 = vadd.f32 0.0, %v417
        %v419 = vpop.f32.mrf.mxu0
        %420 = vmatprep.mubr.f32.mxu0 0.0
        %421 = vmatmul.mubr.f32.gmra.mxu0 %v284
        %v422 = vpop.f32.mrf.mxu0
        %v423 = vadd.f32 0.0, %v422
        %v424 = vpop.f32.mrf.mxu0
        %425 = vmatprep.mubr.f32.mxu0 0.0
        %426 = vmatmul.mubr.f32.gmra.mxu0 %v285
        %v427 = vpop.f32.mrf.mxu0
        %v428 = vadd.f32 0.0, %v427
        %v429 = vpop.f32.mrf.mxu0
        %430 = vmatprep.mubr.f32.mxu0 0.0
        %431 = vmatmul.mubr.f32.gmra.mxu0 %v286
        %v432 = vpop.f32.mrf.mxu0
        %v433 = vadd.f32 0.0, %v432
        %v434 = vpop.f32.mrf.mxu0
        %435 = vmatprep.mubr.f32.mxu0 0.0
        %436 = vmatmul.mubr.f32.gmra.mxu0 %v287
        %v437 = vpop.f32.mrf.mxu0
        %v438 = vadd.f32 0.0, %v437
        %v439 = vpop.f32.mrf.mxu0
        %440 = vmatprep.mubr.f32.mxu0 0.0
        %441 = vmatmul.mubr.f32.gmra.mxu0 %v288
        %v442 = vpop.f32.mrf.mxu0
        %v443 = vadd.f32 0.0, %v442
        %v444 = vpop.f32.mrf.mxu0
        %445 = vmatprep.mubr.f32.mxu0 0.0
        %446 = vmatmul.mubr.f32.gmra.mxu0 %v289
        %v447 = vpop.f32.mrf.mxu0
        %v448 = vadd.f32 0.0, %v447
        %v449 = vpop.f32.mrf.mxu0
        %450 = vdwg.mxu0
        %v451 = vadd.f32 %v373, %v378
        %v452 = vadd.f32 %v451, %v383
        %v453 = vadd.f32 %v452, %v388
        %v454 = vadd.f32 %v453, %v393
        %v455 = vadd.f32 %v454, %v398
        %v456 = vadd.f32 %v455, %v403
        %v457 = vadd.f32 %v456, %v408
        %v458 = vadd.f32 %v457, %v413
        %v459 = vadd.f32 %v458, %v418
        %v460 = vadd.f32 %v459, %v423
        %v461 = vadd.f32 %v460, %v428
        %v462 = vadd.f32 %v461, %v433
        %v463 = vadd.f32 %v462, %v438
        %v464 = vadd.f32 %v463, %v443
        %v465 = vadd.f32 %v464, %v448
        %v466 = vrot.slane %v465, 4
        %v467 = vadd.f32 %v465, %v466
        %v468 = vrot.slane %v467, 2
        %v469 = vadd.f32 %v467, %v468
        %v470 = vrot.slane %v469, 1
        %v471 = vadd.f32 %v469, %v470
        %472 = vst [vmem:[%s265] sm:$0x1] %v471
        %v473 = vmul.f32 %v373, %v373
        %v474 = vmul.f32 %v378, %v378
        %v475 = vmul.f32 %v383, %v383
        %v476 = vmul.f32 %v388, %v388
        %v477 = vmul.f32 %v393, %v393
        %v478 = vmul.f32 %v398, %v398
        %v479 = vmul.f32 %v403, %v403
        %v480 = vmul.f32 %v408, %v408
        %v481 = vmul.f32 %v413, %v413
        %v482 = vmul.f32 %v418, %v418
        %v483 = vmul.f32 %v423, %v423
        %v484 = vmul.f32 %v428, %v428
        %v485 = vmul.f32 %v433, %v433
        %v486 = vmul.f32 %v438, %v438
        %v487 = vmul.f32 %v443, %v443
        %v488 = vmul.f32 %v448, %v448
        %v489 = vadd.f32 %v473, %v474
        %v490 = vadd.f32 %v489, %v475
        %v491 = vadd.f32 %v490, %v476
        %v492 = vadd.f32 %v491, %v477
        %v493 = vadd.f32 %v492, %v478
        %v494 = vadd.f32 %v493, %v479
        %v495 = vadd.f32 %v494, %v480
        %v496 = vadd.f32 %v495, %v481
        %v497 = vadd.f32 %v496, %v482
        %v498 = vadd.f32 %v497, %v483
        %v499 = vadd.f32 %v498, %v484
        %v500 = vadd.f32 %v499, %v485
        %v501 = vadd.f32 %v500, %v486
        %v502 = vadd.f32 %v501, %v487
        %v503 = vadd.f32 %v502, %v488
        %v504 = vrot.slane %v503, 4
        %v505 = vadd.f32 %v503, %v504
        %v506 = vrot.slane %v505, 2
        %v507 = vadd.f32 %v505, %v506
        %v508 = vrot.slane %v507, 1
        %v509 = vadd.f32 %v507, %v508
        %510 = vst [vmem:[%s271] sm:$0x1] %v509
        %511 = vst [vmem:[%s259] sm:$0xff] %v373
        %512 = vst [vmem:[%s259 + $0x8] sm:$0xff] %v378
        %513 = vst [vmem:[%s259 + $0x10] sm:$0xff] %v383
        %514 = vst [vmem:[%s259 + $0x18] sm:$0xff] %v388
        %515 = vst [vmem:[%s259 + $0x20] sm:$0xff] %v393
        %516 = vst [vmem:[%s259 + $0x28] sm:$0xff] %v398
        %517 = vst [vmem:[%s259 + $0x30] sm:$0xff] %v403
        %518 = vst [vmem:[%s259 + $0x38] sm:$0xff] %v408
        %519 = vst [vmem:[%s259 + $0x40] sm:$0xff] %v413
        %520 = vst [vmem:[%s259 + $0x48] sm:$0xff] %v418
        %521 = vst [vmem:[%s259 + $0x50] sm:$0xff] %v423
        %522 = vst [vmem:[%s259 + $0x58] sm:$0xff] %v428
        %523 = vst [vmem:[%s259 + $0x60] sm:$0xff] %v433
        %524 = vst [vmem:[%s259 + $0x68] sm:$0xff] %v438
        %525 = vst [vmem:[%s259 + $0x70] sm:$0xff] %v443
        %526 = vst [vmem:[%s259 + $0x78] sm:$0xff] %v448
        %s527 = sand.u32 %s100, 1
        %s528 = scalar_lea.sflag [#allocation4], %s527
        %s529 = sand.u32 %s100, 1
        %s530 = smul.addr %s529, 128
        %s531 = scalar_lea.vmem [#allocation7], %s530
        %s532 = sand.u32 %s26, 1
        %s533 = scalar_lea.sflag [#allocation9], %s532
        %s534 = sand.u32 %s128, 1
        %s535 = scalar_lea.vmem [#allocation8], %s534
        %s536 = sand.u32 %s26, 1
        %s537 = scalar_lea.sflag [#allocation9], %s536
        %s538 = sand.u32 %s156, 1
        %s539 = scalar_lea.vmem [#allocation10], %s538
        // Predicated region
        $region37: #{tpu_custom_call.1} parent=27 // pred_check
          %p540 = pneg %p110
        $region38: #{tpu_custom_call.1} parent=27 // pred_check_branch
          %542 = sbr.rel (%p540) target = $region40
        $region39: #{tpu_custom_call.1} parent=27 // pred_region
          %s543 = smul.u32 16, %s31
          %s545 = ssub.s32 2048, 2048
          %546 = vsyncadd %s528, %s545
          %s547 = sadd.s32 %s30, %s543
          %s548 = smul.addr %s547, 128
          %s549 = scalar_lea.hbm %s2, %s548
          %s550 = sshll.u32 %s531, 4
          %s551 = int_to_ptr.vmem [resolvable:$true] %s550
          %556 = dma.vmem_to_hbm [thread:$0]  %s551, 2048, %s549, %s528, 128, 128, 8
        $region40: #{tpu_custom_call.1} parent=27 // pred_fallthru
          _
        // Predicated region
        $region41: #{tpu_custom_call.1} parent=27 // pred_check
          %p557 = pneg %p138
        $region42: #{tpu_custom_call.1} parent=27 // pred_check_branch
          %559 = sbr.rel (%p557) target = $region44
        $region43: #{tpu_custom_call.1} parent=27 // pred_region
          %s561 = ssub.s32 16, 16
          %562 = vsyncadd %s533, %s561
          %s563 = sadd.s32 %s30, %s31
          %s564 = smul.addr %s563, 16
          %s565 = scalar_lea.hbm %s3, %s564
          %s567 = sshll.u32 %s535, 4
          %s568 = int_to_ptr.vmem [resolvable:$true] %s567
          %570 = dma.vmem_to_hbm [thread:$0]  %s568, 16, %s565, %s533
        $region44: #{tpu_custom_call.1} parent=27 // pred_fallthru
          _
        // Predicated region
        $region45: #{tpu_custom_call.1} parent=27 // pred_check
          %p571 = pneg %p166
        $region46: #{tpu_custom_call.1} parent=27 // pred_check_branch
          %573 = sbr.rel (%p571) target = $region48
        $region47: #{tpu_custom_call.1} parent=27 // pred_region
          %s575 = ssub.s32 16, 16
          %576 = vsyncadd %s537, %s575
          %s577 = sadd.s32 %s30, %s31
          %s578 = smul.addr %s577, 16
          %s579 = scalar_lea.hbm %s4, %s578
          %s581 = sshll.u32 %s539, 4
          %s582 = int_to_ptr.vmem [resolvable:$true] %s581
          %584 = dma.vmem_to_hbm [thread:$0]  %s582, 16, %s579, %s537
        $region48: #{tpu_custom_call.1} parent=27 // pred_fallthru
          _
      $region28: #{tpu_custom_call.1} parent=5 // pred_fallthru
        _
      %p585 = scmp.le.s32.totalorder 2, %s21
      // Predicated region
      $region49: #{tpu_custom_call.1} parent=5 // pred_check
        %p586 = pneg %p585
      $region50: #{tpu_custom_call.1} parent=5 // pred_check_branch
        %588 = sbr.rel (%p586) target = $region52
      $region51: #{tpu_custom_call.1} parent=5 // pred_region
        %s589 = ssub.s32 %s21, 2
        // Predicated region
        $region53: #{tpu_custom_call.1} parent=51 // pred_check
          %p590 = pneg %p116
        $region54: #{tpu_custom_call.1} parent=51 // pred_check_branch
          %592 = sbr.rel (%p590) target = $region56
        $region55: #{tpu_custom_call.1} parent=51 // pred_region
          %s593 = sand.u32 %s101, 1
          %s594 = scalar_lea.sflag [#allocation4], %s593
          %s595 = sand.u32 %s101, 1
          %s596 = smul.addr %s595, 128
          %s597 = scalar_lea.vmem [#allocation7], %s596
          %598 = dma.done %s594, 2048
        $region56: #{tpu_custom_call.1} parent=51 // pred_fallthru
          _
        // Predicated region
        $region57: #{tpu_custom_call.1} parent=51 // pred_check
          %p599 = pneg %p144
        $region58: #{tpu_custom_call.1} parent=51 // pred_check_branch
          %601 = sbr.rel (%p599) target = $region60
        $region59: #{tpu_custom_call.1} parent=51 // pred_region
          %s602 = sand.u32 %s27, 1
          %s603 = scalar_lea.sflag [#allocation9], %s602
          %s604 = sand.u32 %s129, 1
          %s605 = scalar_lea.vmem [#allocation8], %s604
          %606 = dma.done %s603, 16
        $region60: #{tpu_custom_call.1} parent=51 // pred_fallthru
          _
        // Predicated region
        $region61: #{tpu_custom_call.1} parent=51 // pred_check
          %p607 = pneg %p172
        $region62: #{tpu_custom_call.1} parent=51 // pred_check_branch
          %609 = sbr.rel (%p607) target = $region64
        $region63: #{tpu_custom_call.1} parent=51 // pred_region
          %s610 = sand.u32 %s27, 1
          %s611 = scalar_lea.sflag [#allocation9], %s610
          %s612 = sand.u32 %s157, 1
          %s613 = scalar_lea.vmem [#allocation10], %s612
          %614 = dma.done %s611, 16
        $region64: #{tpu_custom_call.1} parent=51 // pred_fallthru
          _
      $region52: #{tpu_custom_call.1} parent=5 // pred_fallthru
        _
    $region6: #{tpu_custom_call.1} parent=1 // loop_footer
      %s25 = sadd.s32 1, %s21
    $region7: #{tpu_custom_call.1} parent=1 // loop_footer_branch
      %20 = sbr.rel target = $region3
    $region8: #{tpu_custom_call.1} parent=1 // loop_exit
      _
    %615 = vsyncpa [#allocation3], 1
    %s616 = scalar_lea.sflag [#allocation3], 1
    %617 = vsyncpa %s616, 1
    %618 = vsyncpa [#allocation6], 1
    %619 = vsyncpa [#allocation4], 1
    %s620 = scalar_lea.sflag [#allocation4], 1
    %621 = vsyncpa %s620, 1
    %622 = vsyncpa [#allocation9], 1
    %s623 = scalar_lea.sflag [#allocation9], 1
    %624 = vsyncpa %s623, 1

</llo_original>
